<compile_context>
chip_gen: v5e
topology: v5e:2x2
jax: 0.10.0
libtpu: 0.0.40
codegen_flags: <defaults>
</compile_context>

<pallas_src>
import jax
import jax.numpy as jnp
from jax.experimental import pallas as pl
from jax.experimental.pallas import tpu as pltpu

SEQ = 4          # fixed by the module: x.view(-1, 50 * 4)
EMB = 50
BN_EPS = 1e-5


def _bn_swish(h, gamma, beta):
    """BatchNorm1d (training-mode batch stats) followed by Swish, in f32."""
    mean = jnp.mean(h, axis=0, keepdims=True)
    var = jnp.mean(jnp.square(h - mean), axis=0, keepdims=True)
    hn = (h - mean) * jax.lax.rsqrt(var + BN_EPS)
    hn = hn * gamma + beta
    return hn * jax.nn.sigmoid(hn)


def encoder_kernel(e_ref,            # (4, B, 50)  f32  per-position embeddings
                   flat_ref,         # (B, 200)    f32  x.view(-1, 200)
                   vec_ref,          # (16, 384)   f32  packed biases/gammas/betas
                   w1m_ref,          # (200, 300)  bf16 W1[:200] + tile(W1[200:250])
                   w1p_ref,          # (50, 300)   bf16 W1[250:300] (xprod block)
                   w2_ref,           # (300, 200)  bf16
                   w3_ref,           # (200, 100)  bf16
                   w4_ref,           # (100, 128)  bf16 (zero-padded output lanes)
                   out_ref):         # (B, 128)    f32
    f32 = jnp.float32
    bf16 = jnp.bfloat16

    d1 = w1m_ref.shape[1]            # 300
    d2 = w2_ref.shape[1]             # 200
    d3 = w3_ref.shape[1]             # 100
    d4 = w4_ref.shape[1]             # padded 2*n_latents

    # torch.prod(x, dim=1) over the 4 character embeddings (f32 VPU).
    xprod = e_ref[0] * e_ref[1] * e_ref[2] * e_ref[3]          # (B, 50)

    # ---- Layer 1: one dominant K=200 MXU call + one K=50 MXU call ----------
    h = jnp.dot(flat_ref[...].astype(bf16), w1m_ref[...],
                preferred_element_type=f32)
    h = h + jnp.dot(xprod.astype(bf16), w1p_ref[...],
                    preferred_element_type=f32)
    h = h + vec_ref[0:1, :d1]                                   # + b1
    h = _bn_swish(h, vec_ref[1:2, :d1], vec_ref[2:3, :d1])

    # ---- Layer 2 ------------------------------------------------------------
    h = jnp.dot(h.astype(bf16), w2_ref[...],
                preferred_element_type=f32) + vec_ref[3:4, :d2]
    h = _bn_swish(h, vec_ref[4:5, :d2], vec_ref[5:6, :d2])

    # ---- Layer 3 ------------------------------------------------------------
    h = jnp.dot(h.astype(bf16), w3_ref[...],
                preferred_element_type=f32) + vec_ref[6:7, :d3]
    h = _bn_swish(h, vec_ref[7:8, :d3], vec_ref[8:9, :d3])

    # ---- Layer 4 (lane-dense padded output) ---------------------------------
    out_ref[...] = (jnp.dot(h.astype(bf16), w4_ref[...],
                            preferred_element_type=f32) + vec_ref[9:10, :d4])


def make_params(key, n_latents, n_characters):
    ks = jax.random.split(key, 16)
    p = {}
    p["embed_w"] = 0.5 * jax.random.normal(ks[0], (n_characters, EMB), jnp.float32)
    # Linear weights stored as (in, out) = torch_weight.T
    p["w1"] = 0.05 * jax.random.normal(ks[1], (300, 300), jnp.float32)
    p["b1"] = 0.05 * jax.random.normal(ks[2], (1, 300), jnp.float32)
    p["g1"] = 1.0 + 0.1 * jax.random.normal(ks[3], (1, 300), jnp.float32)
    p["be1"] = 0.1 * jax.random.normal(ks[4], (1, 300), jnp.float32)
    p["w2"] = 0.05 * jax.random.normal(ks[5], (300, 200), jnp.float32)
    p["b2"] = 0.05 * jax.random.normal(ks[6], (1, 200), jnp.float32)
    p["g2"] = 1.0 + 0.1 * jax.random.normal(ks[7], (1, 200), jnp.float32)
    p["be2"] = 0.1 * jax.random.normal(ks[8], (1, 200), jnp.float32)
    p["w3"] = 0.05 * jax.random.normal(ks[9], (200, 100), jnp.float32)
    p["b3"] = 0.05 * jax.random.normal(ks[10], (1, 100), jnp.float32)
    p["g3"] = 1.0 + 0.1 * jax.random.normal(ks[11], (1, 100), jnp.float32)
    p["be3"] = 0.1 * jax.random.normal(ks[12], (1, 100), jnp.float32)
    p["w4"] = 0.05 * jax.random.normal(ks[13], (100, 2 * n_latents), jnp.float32)
    p["b4"] = 0.05 * jax.random.normal(ks[14], (1, 2 * n_latents), jnp.float32)
    return p


def concat_text_encoder(x, params, n_latents):
    """x: (B, SEQ) int32 character indices. Returns (mu, logvar)."""
    B = x.shape[0]
    two_l = 2 * n_latents
    d4 = max(128, ((two_l + 127) // 128) * 128)     # lane-dense output width
    vec_w = max(384, d4)                            # packed-vector slab width

    # ---- glue: data-dependent embedding gather + static weight prep --------
    # TODO(synk): the embedding gather is data-dependent and kept in plain-JAX
    # glue (a scalar-prefetch gather kernel is possible but unnecessary here).
    emb = jnp.take(params["embed_w"], x, axis=0)          # (B, 4, 50)
    flat = emb.reshape(B, SEQ * EMB)                      # (B, 200) == x.view(-1, 200)
    emb_t = jnp.transpose(emb, (1, 0, 2))                 # (4, B, 50)

    # Fold xsum's weight block into the per-position blocks (exact identity):
    #   flat @ W1[:200] + xsum @ W1[200:250]
    #     == flat @ (W1[:200] + tile(W1[200:250], (4, 1)))
    w1m = params["w1"][:200] + jnp.tile(params["w1"][200:250], (SEQ, 1))
    w1p = params["w1"][250:300]

    # Weights -> bf16 (MXU-native, halves weight DMA / VMEM footprint).
    w1m = w1m.astype(jnp.bfloat16)                        # (200, 300)
    w1p = w1p.astype(jnp.bfloat16)                        # (50, 300)
    w2 = params["w2"].astype(jnp.bfloat16)                # (300, 200)
    w3 = params["w3"].astype(jnp.bfloat16)                # (200, 100)
    w4 = jnp.zeros((params["w4"].shape[0], d4), jnp.bfloat16)
    w4 = w4.at[:, :two_l].set(params["w4"].astype(jnp.bfloat16))   # (100, d4)

    # Pack the ten (1, N) bias / gamma / beta vectors into a single f32 slab.
    vec = jnp.zeros((16, vec_w), jnp.float32)
    vec = vec.at[0, :300].set(params["b1"][0])
    vec = vec.at[1, :300].set(params["g1"][0])
    vec = vec.at[2, :300].set(params["be1"][0])
    vec = vec.at[3, :200].set(params["b2"][0])
    vec = vec.at[4, :200].set(params["g2"][0])
    vec = vec.at[5, :200].set(params["be2"][0])
    vec = vec.at[6, :100].set(params["b3"][0])
    vec = vec.at[7, :100].set(params["g3"][0])
    vec = vec.at[8, :100].set(params["be3"][0])
    vec = vec.at[9, :two_l].set(params["b4"][0])

    vmem = pl.BlockSpec(memory_space=pltpu.MemorySpace.VMEM)
    out = pl.pallas_call(
        encoder_kernel,
        out_shape=jax.ShapeDtypeStruct((B, d4), jnp.float32),
        in_specs=[vmem] * 8,
        out_specs=vmem,
        compiler_params=pltpu.CompilerParams(vmem_limit_bytes=32 * 1024 * 1024),
    )(emb_t, flat, vec, w1m, w1p, w2, w3, w4)

    return out[:, :n_latents], out[:, n_latents:two_l]


def reference(x, params, n_latents):
    """Pure-f32, PyTorch-faithful reference (training-mode BatchNorm)."""
    emb = jnp.take(params["embed_w"], x, axis=0)          # (B, 4, 50)
    xsum = jnp.sum(emb, axis=1)
    xprod = jnp.prod(emb, axis=1)
    flat = emb.reshape(emb.shape[0], SEQ * EMB)
    h = jnp.concatenate([flat, xsum, xprod], axis=1)      # (B, 300)

    def bn_swish(h, g, b):
        mean = jnp.mean(h, axis=0, keepdims=True)
        var = jnp.mean(jnp.square(h - mean), axis=0, keepdims=True)
        hn = (h - mean) / jnp.sqrt(var + BN_EPS) * g + b
        return hn * jax.nn.sigmoid(hn)

    h = bn_swish(h @ params["w1"] + params["b1"], params["g1"], params["be1"])
    h = bn_swish(h @ params["w2"] + params["b2"], params["g2"], params["be2"])
    h = bn_swish(h @ params["w3"] + params["b3"], params["g3"], params["be3"])
    h = h @ params["w4"] + params["b4"]
    return h[:, :n_latents], h[:, n_latents:]


if __name__ == "__main__":
    B = 8
    N_LATENTS = 16
    N_CHARACTERS = 10

    key = jax.random.PRNGKey(0)
    k_params, k_x = jax.random.split(key)
    params = make_params(k_params, N_LATENTS, N_CHARACTERS)
    x = jax.random.randint(k_x, (B, SEQ), 0, N_CHARACTERS, dtype=jnp.int32)

    mu, logvar = concat_text_encoder(x, params, N_LATENTS)
    mu = jax.block_until_ready(mu)
    logvar = jax.block_until_ready(logvar)

    mu_ref, logvar_ref = reference(x, params, N_LATENTS)
    assert mu.shape == (B, N_LATENTS) and logvar.shape == (B, N_LATENTS)
    # Tolerance accounts for the bf16 weight / matmul-operand cast (f32 accum);
    # output values are O(0.5), observed bf16-induced error is well below 1e-2.
    assert jnp.allclose(mu, mu_ref, rtol=2e-2, atol=2e-2)
    assert jnp.allclose(logvar, logvar_ref, rtol=2e-2, atol=2e-2)

    print("KERNEL_OK")
</pallas_src>

<mosaic_0001>
module attributes {stable_mosaic.version = 11 : i64} {
  func.func @encoder_kernel(%arg0: memref<4x8x50xf32, #tpu.memory_space<vmem>>, %arg1: memref<8x200xf32, #tpu.memory_space<vmem>>, %arg2: memref<16x384xf32, #tpu.memory_space<vmem>>, %arg3: memref<200x300xbf16, #tpu.memory_space<vmem>>, %arg4: memref<50x300xbf16, #tpu.memory_space<vmem>>, %arg5: memref<300x200xbf16, #tpu.memory_space<vmem>>, %arg6: memref<200x100xbf16, #tpu.memory_space<vmem>>, %arg7: memref<100x128xbf16, #tpu.memory_space<vmem>>, %arg8: memref<8x128xf32, #tpu.memory_space<vmem>>) attributes {dimension_semantics = [], scalar_prefetch = 0 : i64, scratch_operands = 0 : i64, tpu.core_type = #tpu.core_type<tc>} {
    %c0 = arith.constant 0 : index
    %c0_0 = arith.constant 0 : index
    %c0_1 = arith.constant 0 : index
    %0 = vector.load %arg0[%c0, %c0_0, %c0_1] : memref<4x8x50xf32, #tpu.memory_space<vmem>>, vector<1x8x50xf32>
    %1 = vector.shape_cast %0 : vector<1x8x50xf32> to vector<8x50xf32>
    %c1 = arith.constant 1 : index
    %c0_2 = arith.constant 0 : index
    %c0_3 = arith.constant 0 : index
    %2 = vector.load %arg0[%c1, %c0_2, %c0_3] : memref<4x8x50xf32, #tpu.memory_space<vmem>>, vector<1x8x50xf32>
    %3 = vector.shape_cast %2 : vector<1x8x50xf32> to vector<8x50xf32>
    %4 = arith.mulf %1, %3 : vector<8x50xf32>
    %c2 = arith.constant 2 : index
    %c0_4 = arith.constant 0 : index
    %c0_5 = arith.constant 0 : index
    %5 = vector.load %arg0[%c2, %c0_4, %c0_5] : memref<4x8x50xf32, #tpu.memory_space<vmem>>, vector<1x8x50xf32>
    %6 = vector.shape_cast %5 : vector<1x8x50xf32> to vector<8x50xf32>
    %7 = arith.mulf %4, %6 : vector<8x50xf32>
    %c3 = arith.constant 3 : index
    %c0_6 = arith.constant 0 : index
    %c0_7 = arith.constant 0 : index
    %8 = vector.load %arg0[%c3, %c0_6, %c0_7] : memref<4x8x50xf32, #tpu.memory_space<vmem>>, vector<1x8x50xf32>
    %9 = vector.shape_cast %8 : vector<1x8x50xf32> to vector<8x50xf32>
    %10 = arith.mulf %7, %9 : vector<8x50xf32>
    %c0_8 = arith.constant 0 : index
    %c0_9 = arith.constant 0 : index
    %11 = vector.load %arg1[%c0_8, %c0_9] : memref<8x200xf32, #tpu.memory_space<vmem>>, vector<8x200xf32>
    %12 = arith.truncf %11 : vector<8x200xf32> to vector<8x200xbf16>
    %c0_10 = arith.constant 0 : index
    %c0_11 = arith.constant 0 : index
    %13 = vector.load %arg3[%c0_10, %c0_11] : memref<200x300xbf16, #tpu.memory_space<vmem>>, vector<200x300xbf16>
    %cst = arith.constant dense<0.000000e+00> : vector<8x300xf32>
    %14 = tpu.matmul %12, %13, %cst {dimension_numbers = #tpu.dot_dimension_numbers<[1], [0], [0], [1], [0, 0, 1, 1], [], []>} : vector<8x200xbf16>, vector<200x300xbf16>, vector<8x300xf32> -> vector<8x300xf32>
    %15 = arith.truncf %10 : vector<8x50xf32> to vector<8x50xbf16>
    %c0_12 = arith.constant 0 : index
    %c0_13 = arith.constant 0 : index
    %16 = vector.load %arg4[%c0_12, %c0_13] : memref<50x300xbf16, #tpu.memory_space<vmem>>, vector<50x300xbf16>
    %cst_14 = arith.constant dense<0.000000e+00> : vector<8x300xf32>
    %17 = tpu.matmul %15, %16, %cst_14 {dimension_numbers = #tpu.dot_dimension_numbers<[1], [0], [0], [1], [0, 0, 1, 1], [], []>} : vector<8x50xbf16>, vector<50x300xbf16>, vector<8x300xf32> -> vector<8x300xf32>
    %18 = arith.addf %14, %17 : vector<8x300xf32>
    %c0_15 = arith.constant 0 : index
    %c0_16 = arith.constant 0 : index
    %19 = vector.load %arg2[%c0_15, %c0_16] : memref<16x384xf32, #tpu.memory_space<vmem>>, vector<1x300xf32>
    %20 = vector.broadcast %19 : vector<1x300xf32> to vector<8x300xf32>
    %21 = arith.addf %18, %20 : vector<8x300xf32>
    %c1_17 = arith.constant 1 : index
    %c0_18 = arith.constant 0 : index
    %22 = vector.load %arg2[%c1_17, %c0_18] : memref<16x384xf32, #tpu.memory_space<vmem>>, vector<1x300xf32>
    %c2_19 = arith.constant 2 : index
    %c0_20 = arith.constant 0 : index
    %23 = vector.load %arg2[%c2_19, %c0_20] : memref<16x384xf32, #tpu.memory_space<vmem>>, vector<1x300xf32>
    %cst_21 = arith.constant dense<0.000000e+00> : vector<300xf32>
    %24 = vector.multi_reduction <add>, %21, %cst_21 [0] : vector<8x300xf32> to vector<300xf32>
    %25 = vector.shape_cast %24 : vector<300xf32> to vector<1x300xf32>
    %cst_22 = arith.constant 8.000000e+00 : f32
    %26 = vector.broadcast %cst_22 : f32 to vector<1x300xf32>
    %27 = arith.divf %25, %26 : vector<1x300xf32>
    %28 = vector.broadcast %27 : vector<1x300xf32> to vector<8x300xf32>
    %29 = arith.subf %21, %28 : vector<8x300xf32>
    %30 = arith.mulf %29, %29 : vector<8x300xf32>
    %cst_23 = arith.constant dense<0.000000e+00> : vector<300xf32>
    %31 = vector.multi_reduction <add>, %30, %cst_23 [0] : vector<8x300xf32> to vector<300xf32>
    %32 = vector.shape_cast %31 : vector<300xf32> to vector<1x300xf32>
    %cst_24 = arith.constant 8.000000e+00 : f32
    %33 = vector.broadcast %cst_24 : f32 to vector<1x300xf32>
    %34 = arith.divf %32, %33 : vector<1x300xf32>
    %35 = vector.broadcast %27 : vector<1x300xf32> to vector<8x300xf32>
    %36 = arith.subf %21, %35 : vector<8x300xf32>
    %cst_25 = arith.constant 9.99999974E-6 : f32
    %37 = vector.broadcast %cst_25 : f32 to vector<1x300xf32>
    %38 = arith.addf %34, %37 : vector<1x300xf32>
    %39 = math.rsqrt %38 : vector<1x300xf32>
    %40 = vector.broadcast %39 : vector<1x300xf32> to vector<8x300xf32>
    %41 = arith.mulf %36, %40 : vector<8x300xf32>
    %42 = vector.broadcast %22 : vector<1x300xf32> to vector<8x300xf32>
    %43 = arith.mulf %41, %42 : vector<8x300xf32>
    %44 = vector.broadcast %23 : vector<1x300xf32> to vector<8x300xf32>
    %45 = arith.addf %43, %44 : vector<8x300xf32>
    %46 = arith.negf %45 : vector<8x300xf32>
    %47 = math.exp %46 : vector<8x300xf32>
    %cst_26 = arith.constant 1.000000e+00 : f32
    %48 = vector.broadcast %cst_26 : f32 to vector<8x300xf32>
    %49 = arith.addf %48, %47 : vector<8x300xf32>
    %50 = arith.divf %48, %49 : vector<8x300xf32>
    %51 = arith.mulf %45, %50 : vector<8x300xf32>
    %52 = arith.truncf %51 : vector<8x300xf32> to vector<8x300xbf16>
    %c0_27 = arith.constant 0 : index
    %c0_28 = arith.constant 0 : index
    %53 = vector.load %arg5[%c0_27, %c0_28] : memref<300x200xbf16, #tpu.memory_space<vmem>>, vector<300x200xbf16>
    %cst_29 = arith.constant dense<0.000000e+00> : vector<8x200xf32>
    %54 = tpu.matmul %52, %53, %cst_29 {dimension_numbers = #tpu.dot_dimension_numbers<[1], [0], [0], [1], [0, 0, 1, 1], [], []>} : vector<8x300xbf16>, vector<300x200xbf16>, vector<8x200xf32> -> vector<8x200xf32>
    %c3_30 = arith.constant 3 : index
    %c0_31 = arith.constant 0 : index
    %55 = vector.load %arg2[%c3_30, %c0_31] : memref<16x384xf32, #tpu.memory_space<vmem>>, vector<1x200xf32>
    %56 = vector.broadcast %55 : vector<1x200xf32> to vector<8x200xf32>
    %57 = arith.addf %54, %56 : vector<8x200xf32>
    %c4 = arith.constant 4 : index
    %c0_32 = arith.constant 0 : index
    %58 = vector.load %arg2[%c4, %c0_32] : memref<16x384xf32, #tpu.memory_space<vmem>>, vector<1x200xf32>
    %c5 = arith.constant 5 : index
    %c0_33 = arith.constant 0 : index
    %59 = vector.load %arg2[%c5, %c0_33] : memref<16x384xf32, #tpu.memory_space<vmem>>, vector<1x200xf32>
    %cst_34 = arith.constant dense<0.000000e+00> : vector<200xf32>
    %60 = vector.multi_reduction <add>, %57, %cst_34 [0] : vector<8x200xf32> to vector<200xf32>
    %61 = vector.shape_cast %60 : vector<200xf32> to vector<1x200xf32>
    %cst_35 = arith.constant 8.000000e+00 : f32
    %62 = vector.broadcast %cst_35 : f32 to vector<1x200xf32>
    %63 = arith.divf %61, %62 : vector<1x200xf32>
    %64 = vector.broadcast %63 : vector<1x200xf32> to vector<8x200xf32>
    %65 = arith.subf %57, %64 : vector<8x200xf32>
    %66 = arith.mulf %65, %65 : vector<8x200xf32>
    %cst_36 = arith.constant dense<0.000000e+00> : vector<200xf32>
    %67 = vector.multi_reduction <add>, %66, %cst_36 [0] : vector<8x200xf32> to vector<200xf32>
    %68 = vector.shape_cast %67 : vector<200xf32> to vector<1x200xf32>
    %cst_37 = arith.constant 8.000000e+00 : f32
    %69 = vector.broadcast %cst_37 : f32 to vector<1x200xf32>
    %70 = arith.divf %68, %69 : vector<1x200xf32>
    %71 = vector.broadcast %63 : vector<1x200xf32> to vector<8x200xf32>
    %72 = arith.subf %57, %71 : vector<8x200xf32>
    %cst_38 = arith.constant 9.99999974E-6 : f32
    %73 = vector.broadcast %cst_38 : f32 to vector<1x200xf32>
    %74 = arith.addf %70, %73 : vector<1x200xf32>
    %75 = math.rsqrt %74 : vector<1x200xf32>
    %76 = vector.broadcast %75 : vector<1x200xf32> to vector<8x200xf32>
    %77 = arith.mulf %72, %76 : vector<8x200xf32>
    %78 = vector.broadcast %58 : vector<1x200xf32> to vector<8x200xf32>
    %79 = arith.mulf %77, %78 : vector<8x200xf32>
    %80 = vector.broadcast %59 : vector<1x200xf32> to vector<8x200xf32>
    %81 = arith.addf %79, %80 : vector<8x200xf32>
    %82 = arith.negf %81 : vector<8x200xf32>
    %83 = math.exp %82 : vector<8x200xf32>
    %cst_39 = arith.constant 1.000000e+00 : f32
    %84 = vector.broadcast %cst_39 : f32 to vector<8x200xf32>
    %85 = arith.addf %84, %83 : vector<8x200xf32>
    %86 = arith.divf %84, %85 : vector<8x200xf32>
    %87 = arith.mulf %81, %86 : vector<8x200xf32>
    %88 = arith.truncf %87 : vector<8x200xf32> to vector<8x200xbf16>
    %c0_40 = arith.constant 0 : index
    %c0_41 = arith.constant 0 : index
    %89 = vector.load %arg6[%c0_40, %c0_41] : memref<200x100xbf16, #tpu.memory_space<vmem>>, vector<200x100xbf16>
    %cst_42 = arith.constant dense<0.000000e+00> : vector<8x100xf32>
    %90 = tpu.matmul %88, %89, %cst_42 {dimension_numbers = #tpu.dot_dimension_numbers<[1], [0], [0], [1], [0, 0, 1, 1], [], []>} : vector<8x200xbf16>, vector<200x100xbf16>, vector<8x100xf32> -> vector<8x100xf32>
    %c6 = arith.constant 6 : index
    %c0_43 = arith.constant 0 : index
    %91 = vector.load %arg2[%c6, %c0_43] : memref<16x384xf32, #tpu.memory_space<vmem>>, vector<1x100xf32>
    %92 = vector.broadcast %91 : vector<1x100xf32> to vector<8x100xf32>
    %93 = arith.addf %90, %92 : vector<8x100xf32>
    %c7 = arith.constant 7 : index
    %c0_44 = arith.constant 0 : index
    %94 = vector.load %arg2[%c7, %c0_44] : memref<16x384xf32, #tpu.memory_space<vmem>>, vector<1x100xf32>
    %c8 = arith.constant 8 : index
    %c0_45 = arith.constant 0 : index
    %95 = vector.load %arg2[%c8, %c0_45] : memref<16x384xf32, #tpu.memory_space<vmem>>, vector<1x100xf32>
    %cst_46 = arith.constant dense<0.000000e+00> : vector<100xf32>
    %96 = vector.multi_reduction <add>, %93, %cst_46 [0] : vector<8x100xf32> to vector<100xf32>
    %97 = vector.shape_cast %96 : vector<100xf32> to vector<1x100xf32>
    %cst_47 = arith.constant 8.000000e+00 : f32
    %98 = vector.broadcast %cst_47 : f32 to vector<1x100xf32>
    %99 = arith.divf %97, %98 : vector<1x100xf32>
    %100 = vector.broadcast %99 : vector<1x100xf32> to vector<8x100xf32>
    %101 = arith.subf %93, %100 : vector<8x100xf32>
    %102 = arith.mulf %101, %101 : vector<8x100xf32>
    %cst_48 = arith.constant dense<0.000000e+00> : vector<100xf32>
    %103 = vector.multi_reduction <add>, %102, %cst_48 [0] : vector<8x100xf32> to vector<100xf32>
    %104 = vector.shape_cast %103 : vector<100xf32> to vector<1x100xf32>
    %cst_49 = arith.constant 8.000000e+00 : f32
    %105 = vector.broadcast %cst_49 : f32 to vector<1x100xf32>
    %106 = arith.divf %104, %105 : vector<1x100xf32>
    %107 = vector.broadcast %99 : vector<1x100xf32> to vector<8x100xf32>
    %108 = arith.subf %93, %107 : vector<8x100xf32>
    %cst_50 = arith.constant 9.99999974E-6 : f32
    %109 = vector.broadcast %cst_50 : f32 to vector<1x100xf32>
    %110 = arith.addf %106, %109 : vector<1x100xf32>
    %111 = math.rsqrt %110 : vector<1x100xf32>
    %112 = vector.broadcast %111 : vector<1x100xf32> to vector<8x100xf32>
    %113 = arith.mulf %108, %112 : vector<8x100xf32>
    %114 = vector.broadcast %94 : vector<1x100xf32> to vector<8x100xf32>
    %115 = arith.mulf %113, %114 : vector<8x100xf32>
    %116 = vector.broadcast %95 : vector<1x100xf32> to vector<8x100xf32>
    %117 = arith.addf %115, %116 : vector<8x100xf32>
    %118 = arith.negf %117 : vector<8x100xf32>
    %119 = math.exp %118 : vector<8x100xf32>
    %cst_51 = arith.constant 1.000000e+00 : f32
    %120 = vector.broadcast %cst_51 : f32 to vector<8x100xf32>
    %121 = arith.addf %120, %119 : vector<8x100xf32>
    %122 = arith.divf %120, %121 : vector<8x100xf32>
    %123 = arith.mulf %117, %122 : vector<8x100xf32>
    %124 = arith.truncf %123 : vector<8x100xf32> to vector<8x100xbf16>
    %c0_52 = arith.constant 0 : index
    %c0_53 = arith.constant 0 : index
    %125 = vector.load %arg7[%c0_52, %c0_53] : memref<100x128xbf16, #tpu.memory_space<vmem>>, vector<100x128xbf16>
    %cst_54 = arith.constant dense<0.000000e+00> : vector<8x128xf32>
    %126 = tpu.matmul %124, %125, %cst_54 {dimension_numbers = #tpu.dot_dimension_numbers<[1], [0], [0], [1], [0, 0, 1, 1], [], []>} : vector<8x100xbf16>, vector<100x128xbf16>, vector<8x128xf32> -> vector<8x128xf32>
    %c9 = arith.constant 9 : index
    %c0_55 = arith.constant 0 : index
    %127 = vector.load %arg2[%c9, %c0_55] : memref<16x384xf32, #tpu.memory_space<vmem>>, vector<1x128xf32>
    %128 = vector.broadcast %127 : vector<1x128xf32> to vector<8x128xf32>
    %129 = arith.addf %126, %128 : vector<8x128xf32>
    %c0_56 = arith.constant 0 : index
    %c0_57 = arith.constant 0 : index
    %130 = vector.load %arg8[%c0_56, %c0_57] : memref<8x128xf32, #tpu.memory_space<vmem>>, vector<8x128xf32>
    tpu.vector_store %arg8[%c0_56, %c0_57], %129 {strides = array<i32>} : memref<8x128xf32, #tpu.memory_space<vmem>>, vector<8x128xf32>,
    return
  }
}

</mosaic_0001>

<llo_original>
// kernel: tpu_custom_call.1
$region0: #{tpu_custom_call.1}
  #allocation0 [shape = 'u32[]', space=smem, size = 0x4, offset = 0x4, fixed_abs, tag = 'smem constant byte address 0x4 - core index']
  #allocation1 [shape = 'u32[72,128]{1,0:T(1,128)}', space=vmem, size = 0x9000, scoped, tag = 'internal scratch']
  %s0 = inlined_call_operand.hbm [shape: f32[4,8,50], index: 0, kind: input, shape index: {}]
  %s1 = inlined_call_operand.vmem [shape: f32[8,200], index: 1, kind: input, shape index: {}]
  %s2 = inlined_call_operand.vmem [shape: f32[16,384], index: 2, kind: input, shape index: {}]
  %s3 = inlined_call_operand.vmem [shape: bf16[200,300], index: 3, kind: input, shape index: {}]
  %s4 = inlined_call_operand.vmem [shape: bf16[50,300], index: 4, kind: input, shape index: {}]
  %s5 = inlined_call_operand.vmem [shape: bf16[300,200], index: 5, kind: input, shape index: {}]
  %s6 = inlined_call_operand.vmem [shape: bf16[200,100], index: 6, kind: input, shape index: {}]
  %s7 = inlined_call_operand.vmem [shape: bf16[100,128], index: 7, kind: input, shape index: {}]
  %s8 = inlined_call_operand.hbm [shape: f32[8,128], index: 8, kind: output, shape index: {}]
  %s9 = sld [smem:[#allocation0]]
  $region46: #{tpu_custom_call.1} parent=0
    _
  %s11 = ssub.s32 1, %s9
  %s12 = scalar_select 0, %s11, %s9
  $region1: #{tpu_custom_call.1} parent=0
    #allocation2 [shape = 'u8[16384]{0}', space=vmem, size = 0x4000, scoped, tag = 'input window, operand 0, single buffered']
    #allocation3 [shape = 's32[1]{0}', space=sflag, size = 0x4, scoped, tag = 'scoped memory for tpu_custom_call.1']
    #allocation4 [shape = 's32[1]{0}', space=sflag, size = 0x4, scoped, tag = 'scoped memory for tpu_custom_call.1']
    #allocation5 [shape = 'u8[4096]{0}', space=vmem, size = 0x1000, scoped, tag = 'output window, operand 0, single buffered']
    %13 = vsyncpa [#allocation3], 0
    %14 = vsyncpa [#allocation4], 0
    // Predicated region
    $region2: #{tpu_custom_call.1} parent=1 // pred_check
      _
    $region3: #{tpu_custom_call.1} parent=1 // pred_check_branch
      %16 = sbr.rel (0) target = $region5
    $region4: #{tpu_custom_call.1} parent=1 // pred_region
      %18 = vsyncadd [#allocation3], 0
      %s19 = sshll.u32 %s0, 4
      %s20 = int_to_ptr.hbm [resolvable:$true] %s19
      %s21 = sshll.u32 [#allocation2], 4
      %s22 = int_to_ptr.vmem [resolvable:$true] %s21
      %27 = dma.hbm_to_vmem [thread:$0]  %s20, 512, %s22, [#allocation3], 128, 128, 8
    $region5: #{tpu_custom_call.1} parent=1 // pred_fallthru
      _
    // Predicated region
    $region6: #{tpu_custom_call.1} parent=1 // pred_check
      _
    $region7: #{tpu_custom_call.1} parent=1 // pred_check_branch
      %29 = sbr.rel (0) target = $region9
    $region8: #{tpu_custom_call.1} parent=1 // pred_region
      _
    $region9: #{tpu_custom_call.1} parent=1 // pred_fallthru
      _
    // Predicated region
    $region10: #{tpu_custom_call.1} parent=1 // pred_check
      _
    $region11: #{tpu_custom_call.1} parent=1 // pred_check_branch
      %31 = sbr.rel (0) target = $region13
    $region12: #{tpu_custom_call.1} parent=1 // pred_region
      _
    $region13: #{tpu_custom_call.1} parent=1 // pred_fallthru
      _
    // Predicated region
    $region14: #{tpu_custom_call.1} parent=1 // pred_check
      _
    $region15: #{tpu_custom_call.1} parent=1 // pred_check_branch
      %33 = sbr.rel (0) target = $region17
    $region16: #{tpu_custom_call.1} parent=1 // pred_region
      _
    $region17: #{tpu_custom_call.1} parent=1 // pred_fallthru
      _
    // Predicated region
    $region18: #{tpu_custom_call.1} parent=1 // pred_check
      _
    $region19: #{tpu_custom_call.1} parent=1 // pred_check_branch
      %35 = sbr.rel (0) target = $region21
    $region20: #{tpu_custom_call.1} parent=1 // pred_region
      _
    $region21: #{tpu_custom_call.1} parent=1 // pred_fallthru
      _
    // Predicated region
    $region22: #{tpu_custom_call.1} parent=1 // pred_check
      _
    $region23: #{tpu_custom_call.1} parent=1 // pred_check_branch
      %37 = sbr.rel (0) target = $region25
    $region24: #{tpu_custom_call.1} parent=1 // pred_region
      _
    $region25: #{tpu_custom_call.1} parent=1 // pred_fallthru
      _
    // Predicated region
    $region26: #{tpu_custom_call.1} parent=1 // pred_check
      _
    $region27: #{tpu_custom_call.1} parent=1 // pred_check_branch
      %39 = sbr.rel (0) target = $region29
    $region28: #{tpu_custom_call.1} parent=1 // pred_region
      _
    $region29: #{tpu_custom_call.1} parent=1 // pred_fallthru
      _
    // Predicated region
    $region30: #{tpu_custom_call.1} parent=1 // pred_check
      _
    $region31: #{tpu_custom_call.1} parent=1 // pred_check_branch
      %41 = sbr.rel (0) target = $region33
    $region32: #{tpu_custom_call.1} parent=1 // pred_region
      _
    $region33: #{tpu_custom_call.1} parent=1 // pred_fallthru
      _
    // Predicated region
    $region34: #{tpu_custom_call.1} parent=1 // pred_check
      _
    $region35: #{tpu_custom_call.1} parent=1 // pred_check_branch
      %43 = sbr.rel (0) target = $region37
    $region36: #{tpu_custom_call.1} parent=1 // pred_region
      %45 = dma.done [#allocation3], 512
    $region37: #{tpu_custom_call.1} parent=1 // pred_fallthru
      _
    %v47 = vld [vmem:[#allocation2] sm:$0xff]
    %s48 = scalar_lea.vmem [#allocation2], 8
    %v49 = vld [vmem:[%s48] sm:$0xff]
    %v50 = vmul.f32 %v47, %v49
    %s51 = scalar_lea.vmem [#allocation2], 16
    %v52 = vld [vmem:[%s51] sm:$0xff]
    %v53 = vmul.f32 %v50, %v52
    %s54 = scalar_lea.vmem [#allocation2], 24
    %v55 = vld [vmem:[%s54] sm:$0xff]
    %v56 = vmul.f32 %v53, %v55
    %v57 = vld [vmem:[%s1] sm:$0xff]
    %v58 = vld [vmem:[%s1 + $0x8] sm:$0xff]
    %v59 = vpack.c.bf16 %v57, %v57
    %v60 = vpack.c.bf16 %v58, %v58
    %v61 = vld [vmem:[%s3] sm:$0xff]
    %v62 = vld [vmem:[%s3 + $0x8] sm:$0xf]
    %v63 = vld [vmem:[%s3 + $0xc] sm:$0xff]
    %v64 = vld [vmem:[%s3 + $0x14] sm:$0xf]
    %v65 = vld [vmem:[%s3 + $0x18] sm:$0xff]
    %v66 = vld [vmem:[%s3 + $0x20] sm:$0xf]
    %v67 = vld [vmem:[%s3 + $0x24] sm:$0xff]
    %v68 = vld [vmem:[%s3 + $0x2c] sm:$0xf]
    %v69 = vld [vmem:[%s3 + $0x30] sm:$0xff]
    %v70 = vld [vmem:[%s3 + $0x38] sm:$0xf]
    %v71 = vld [vmem:[%s3 + $0x3c] sm:$0xff]
    %v72 = vld [vmem:[%s3 + $0x44] sm:$0xf]
    %v73 = vld [vmem:[%s3 + $0x48] sm:$0xff]
    %v74 = vld [vmem:[%s3 + $0x50] sm:$0xf]
    %v75 = vld [vmem:[%s3 + $0x54] sm:$0xff]
    %v76 = vld [vmem:[%s3 + $0x5c] sm:$0xf]
    %v77 = vld [vmem:[%s3 + $0x60] sm:$0xff]
    %v78 = vld [vmem:[%s3 + $0x68] sm:$0xf]
    %v79 = vld [vmem:[%s3 + $0x6c] sm:$0xff]
    %v80 = vld [vmem:[%s3 + $0x74] sm:$0xf]
    %v81 = vld [vmem:[%s3 + $0x78] sm:$0xff]
    %v82 = vld [vmem:[%s3 + $0x80] sm:$0xf]
    %v83 = vld [vmem:[%s3 + $0x84] sm:$0xff]
    %v84 = vld [vmem:[%s3 + $0x8c] sm:$0xf]
    %v85 = vld [vmem:[%s3 + $0x90] sm:$0xff]
    %v86 = vld [vmem:[%s3 + $0x98] sm:$0xf]
    %v87 = vld [vmem:[%s3 + $0x9c] sm:$0xff]
    %v88 = vld [vmem:[%s3 + $0xa4] sm:$0xf]
    %v89 = vld [vmem:[%s3 + $0xa8] sm:$0xff]
    %v90 = vld [vmem:[%s3 + $0xb0] sm:$0xf]
    %v91 = vld [vmem:[%s3 + $0xb4] sm:$0xff]
    %v92 = vld [vmem:[%s3 + $0xbc] sm:$0xf]
    %v93 = vld [vmem:[%s3 + $0xc0] sm:$0xff]
    %v94 = vld [vmem:[%s3 + $0xc8] sm:$0xf]
    %v95 = vld [vmem:[%s3 + $0xcc] sm:$0xff]
    %v96 = vld [vmem:[%s3 + $0xd4] sm:$0xf]
    %v97 = vld [vmem:[%s3 + $0xd8] sm:$0xff]
    %v98 = vld [vmem:[%s3 + $0xe0] sm:$0xf]
    %v99 = vld [vmem:[%s3 + $0xe4] sm:$0xff]
    %v100 = vld [vmem:[%s3 + $0xec] sm:$0xf]
    %v101 = vld [vmem:[%s3 + $0xf0] sm:$0xff]
    %v102 = vld [vmem:[%s3 + $0xf8] sm:$0xf]
    %v103 = vld [vmem:[%s3 + $0xfc] sm:$0xff]
    %v104 = vld [vmem:[%s3 + $0x104] sm:$0xf]
    %v105 = vld [vmem:[%s3 + $0x108] sm:$0xff]
    %v106 = vld [vmem:[%s3 + $0x110] sm:$0xf]
    %v107 = vld [vmem:[%s3 + $0x114] sm:$0xff]
    %v108 = vld [vmem:[%s3 + $0x11c] sm:$0xf]
    %v109 = vld [vmem:[%s3 + $0x120] sm:$0xff]
    %v110 = vld [vmem:[%s3 + $0x128] sm:$0xf]
    %v111 = vpack.c.bf16 %v56, %v56
    %v112 = vld [vmem:[%s4] sm:$0xff]
    %v113 = vld [vmem:[%s4 + $0x8] sm:$0xf]
    %v114 = vld [vmem:[%s4 + $0xc] sm:$0xff]
    %v115 = vld [vmem:[%s4 + $0x14] sm:$0xf]
    %v116 = vld [vmem:[%s4 + $0x18] sm:$0xff]
    %v117 = vld [vmem:[%s4 + $0x20] sm:$0xf]
    %v118 = vld [vmem:[%s4 + $0x24] sm:$0xff]
    %v119 = vld [vmem:[%s4 + $0x2c] sm:$0xf]
    %v120 = vld [vmem:[%s4 + $0x30] sm:$0xff]
    %v121 = vld [vmem:[%s4 + $0x38] sm:$0xf]
    %v122 = vld [vmem:[%s4 + $0x3c] sm:$0xff]
    %v123 = vld [vmem:[%s4 + $0x44] sm:$0xf]
    %v124 = vld [vmem:[%s4 + $0x48] sm:$0x11]
    %v125 = vld [vmem:[%s4 + $0x50] sm:$0x1]
    %v140 = vunpack.c.l.b16 %v112
    %v141 = vunpack.c.h.b16 %v112
    %v142 = vunpack.c.l.b16 %v113
    %v143 = vunpack.c.l.b16 %v114
    %v144 = vunpack.c.h.b16 %v114
    %v145 = vunpack.c.l.b16 %v115
    %v146 = vunpack.c.l.b16 %v116
    %v147 = vunpack.c.h.b16 %v116
    %v148 = vunpack.c.l.b16 %v117
    %v149 = vunpack.c.l.b16 %v118
    %v150 = vunpack.c.h.b16 %v118
    %v151 = vunpack.c.l.b16 %v119
    %v152 = vunpack.c.l.b16 %v120
    %v153 = vunpack.c.h.b16 %v120
    %v154 = vunpack.c.l.b16 %v121
    %v155 = vunpack.c.l.b16 %v122
    %v156 = vunpack.c.h.b16 %v122
    %v157 = vunpack.c.l.b16 %v123
    %v158 = vunpack.c.l.b16 %v124
    %v159 = vunpack.c.h.b16 %v124
    %v160 = vunpack.c.l.b16 %v125
    %v161 = vpack.c.b16 %v143, %v140
    %v162 = vpack.c.b16 %v144, %v141
    %v163 = vpack.c.b16 %v145, %v142
    %v164 = vpack.c.b16 %v149, %v146
    %v165 = vpack.c.b16 %v150, %v147
    %v166 = vpack.c.b16 %v151, %v148
    %v167 = vpack.c.b16 %v155, %v152
    %v168 = vpack.c.b16 %v156, %v153
    %v169 = vpack.c.b16 %v157, %v154
    %v170 = vpack.c.b16 %v158, %v158
    %v171 = vpack.c.b16 %v159, %v159
    %v172 = vpack.c.b16 %v160, %v160
    %vm182 = vcmask 408576
    %v184 = vsel %vm182, %v111, 0
    %vm186 = vcmask 1040384
    %v188 = vsel %vm186, %v170, 0
    %v191 = vsel %vm186, %v171, 0
    %v194 = vsel %vm186, %v172, 0
    %196 = vmatpush.bf16.msra.mxu0 0
    %197 = vmatpush.bf16.msra.mxu0 0
    %198 = vmatpush.bf16.msra.mxu0 0
    %199 = vmatpush.bf16.msra.mxu0 0
    %200 = vmatpush.bf16.msra.mxu0 %v188
    %201 = vmatpush.bf16.msra.mxu0 %v167
    %202 = vmatpush.bf16.msra.mxu0 %v164
    %203 = vmatpush.bf16.msra.mxu0 %v161
    %204 = vmatmul.bf16.gmra.mxu0 %v184
    %v205 = vpop.f32.mrf.mxu0
    %v206 = vadd.f32 0.0, %v205
    %v207 = vpop.f32.mrf.mxu0
    %208 = vdwg.mxu0
    %209 = vmatpush.bf16.msra.mxu0 0
    %210 = vmatpush.bf16.msra.mxu0 0
    %211 = vmatpush.bf16.msra.mxu0 0
    %212 = vmatpush.bf16.msra.mxu0 0
    %213 = vmatpush.bf16.msra.mxu0 %v191
    %214 = vmatpush.bf16.msra.mxu0 %v168
    %215 = vmatpush.bf16.msra.mxu0 %v165
    %216 = vmatpush.bf16.msra.mxu0 %v162
    %217 = vmatmul.bf16.gmra.mxu0 %v184
    %v218 = vpop.f32.mrf.mxu0
    %v219 = vadd.f32 0.0, %v218
    %v220 = vpop.f32.mrf.mxu0
    %221 = vdwg.mxu0
    %222 = vmatpush.bf16.msra.mxu0 0
    %223 = vmatpush.bf16.msra.mxu0 0
    %224 = vmatpush.bf16.msra.mxu0 0
    %225 = vmatpush.bf16.msra.mxu0 0
    %226 = vmatpush.bf16.msra.mxu0 %v194
    %227 = vmatpush.bf16.msra.mxu0 %v169
    %228 = vmatpush.bf16.msra.mxu0 %v166
    %229 = vmatpush.bf16.msra.mxu0 %v163
    %230 = vmatmul.bf16.gmra.mxu0 %v184
    %v231 = vpop.f32.mrf.mxu0
    %v232 = vadd.f32 0.0, %v231
    %v233 = vpop.f32.mrf.mxu0
    %234 = vdwg.mxu0
    %v285 = vunpack.c.l.b16 %v61
    %v286 = vunpack.c.h.b16 %v61
    %v287 = vunpack.c.l.b16 %v62
    %v288 = vunpack.c.l.b16 %v63
    %v289 = vunpack.c.h.b16 %v63
    %v290 = vunpack.c.l.b16 %v64
    %v291 = vunpack.c.l.b16 %v65
    %v292 = vunpack.c.h.b16 %v65
    %v293 = vunpack.c.l.b16 %v66
    %v294 = vunpack.c.l.b16 %v67
    %v295 = vunpack.c.h.b16 %v67
    %v296 = vunpack.c.l.b16 %v68
    %v297 = vunpack.c.l.b16 %v69
    %v298 = vunpack.c.h.b16 %v69
    %v299 = vunpack.c.l.b16 %v70
    %v300 = vunpack.c.l.b16 %v71
    %v301 = vunpack.c.h.b16 %v71
    %v302 = vunpack.c.l.b16 %v72
    %v303 = vunpack.c.l.b16 %v73
    %v304 = vunpack.c.h.b16 %v73
    %v305 = vunpack.c.l.b16 %v74
    %v306 = vunpack.c.l.b16 %v75
    %v307 = vunpack.c.h.b16 %v75
    %v308 = vunpack.c.l.b16 %v76
    %v309 = vunpack.c.l.b16 %v77
    %v310 = vunpack.c.h.b16 %v77
    %v311 = vunpack.c.l.b16 %v78
    %v312 = vunpack.c.l.b16 %v79
    %v313 = vunpack.c.h.b16 %v79
    %v314 = vunpack.c.l.b16 %v80
    %v315 = vunpack.c.l.b16 %v81
    %v316 = vunpack.c.h.b16 %v81
    %v317 = vunpack.c.l.b16 %v82
    %v318 = vunpack.c.l.b16 %v83
    %v319 = vunpack.c.h.b16 %v83
    %v320 = vunpack.c.l.b16 %v84
    %v321 = vunpack.c.l.b16 %v85
    %v322 = vunpack.c.h.b16 %v85
    %v323 = vunpack.c.l.b16 %v86
    %v324 = vunpack.c.l.b16 %v87
    %v325 = vunpack.c.h.b16 %v87
    %v326 = vunpack.c.l.b16 %v88
    %v327 = vunpack.c.l.b16 %v89
    %v328 = vunpack.c.h.b16 %v89
    %v329 = vunpack.c.l.b16 %v90
    %v330 = vunpack.c.l.b16 %v91
    %v331 = vunpack.c.h.b16 %v91
    %v332 = vunpack.c.l.b16 %v92
    %v333 = vunpack.c.l.b16 %v93
    %v334 = vunpack.c.h.b16 %v93
    %v335 = vunpack.c.l.b16 %v94
    %v336 = vunpack.c.l.b16 %v95
    %v337 = vunpack.c.h.b16 %v95
    %v338 = vunpack.c.l.b16 %v96
    %v339 = vunpack.c.l.b16 %v97
    %v340 = vunpack.c.h.b16 %v97
    %v341 = vunpack.c.l.b16 %v98
    %v342 = vunpack.c.l.b16 %v99
    %v343 = vunpack.c.h.b16 %v99
    %v344 = vunpack.c.l.b16 %v100
    %v345 = vunpack.c.l.b16 %v101
    %v346 = vunpack.c.h.b16 %v101
    %v347 = vunpack.c.l.b16 %v102
    %v348 = vunpack.c.l.b16 %v103
    %v349 = vunpack.c.h.b16 %v103
    %v350 = vunpack.c.l.b16 %v104
    %v351 = vunpack.c.l.b16 %v105
    %v352 = vunpack.c.h.b16 %v105
    %v353 = vunpack.c.l.b16 %v106
    %v354 = vunpack.c.l.b16 %v107
    %v355 = vunpack.c.h.b16 %v107
    %v356 = vunpack.c.l.b16 %v108
    %v357 = vunpack.c.l.b16 %v109
    %v358 = vunpack.c.h.b16 %v109
    %v359 = vunpack.c.l.b16 %v110
    %v360 = vpack.c.b16 %v288, %v285
    %v361 = vpack.c.b16 %v289, %v286
    %v362 = vpack.c.b16 %v290, %v287
    %v363 = vpack.c.b16 %v294, %v291
    %v364 = vpack.c.b16 %v295, %v292
    %v365 = vpack.c.b16 %v296, %v293
    %v366 = vpack.c.b16 %v300, %v297
    %v367 = vpack.c.b16 %v301, %v298
    %v368 = vpack.c.b16 %v302, %v299
    %v369 = vpack.c.b16 %v306, %v303
    %v370 = vpack.c.b16 %v307, %v304
    %v371 = vpack.c.b16 %v308, %v305
    %v372 = vpack.c.b16 %v312, %v309
    %v373 = vpack.c.b16 %v313, %v310
    %v374 = vpack.c.b16 %v314, %v311
    %v375 = vpack.c.b16 %v318, %v315
    %v376 = vpack.c.b16 %v319, %v316
    %v377 = vpack.c.b16 %v320, %v317
    %v378 = vpack.c.b16 %v324, %v321
    %v379 = vpack.c.b16 %v325, %v322
    %v380 = vpack.c.b16 %v326, %v323
    %v381 = vpack.c.b16 %v330, %v327
    %v382 = vpack.c.b16 %v331, %v328
    %v383 = vpack.c.b16 %v332, %v329
    %v384 = vpack.c.b16 %v336, %v333
    %v385 = vpack.c.b16 %v337, %v334
    %v386 = vpack.c.b16 %v338, %v335
    %v387 = vpack.c.b16 %v342, %v339
    %v388 = vpack.c.b16 %v343, %v340
    %v389 = vpack.c.b16 %v344, %v341
    %v390 = vpack.c.b16 %v348, %v345
    %v391 = vpack.c.b16 %v349, %v346
    %v392 = vpack.c.b16 %v350, %v347
    %v393 = vpack.c.b16 %v354, %v351
    %v394 = vpack.c.b16 %v355, %v352
    %v395 = vpack.c.b16 %v356, %v353
    %v396 = vpack.c.b16 %v357, %v357
    %v397 = vpack.c.b16 %v358, %v358
    %v398 = vpack.c.b16 %v359, %v359
    %vm435 = vcmask 588800
    %v437 = vsel %vm435, %v60, 0
    %vm439 = vcmask 1043456
    %v441 = vsel %vm439, %v396, 0
    %v444 = vsel %vm439, %v397, 0
    %v447 = vsel %vm439, %v398, 0
    %449 = vmatpush.bf16.msra.mxu0 %v381
    %450 = vmatpush.bf16.msra.mxu0 %v378
    %451 = vmatpush.bf16.msra.mxu0 %v375
    %452 = vmatpush.bf16.msra.mxu0 %v372
    %453 = vmatpush.bf16.msra.mxu0 %v369
    %454 = vmatpush.bf16.msra.mxu0 %v366
    %455 = vmatpush.bf16.msra.mxu0 %v363
    %456 = vmatpush.bf16.msra.mxu0 %v360
    %457 = vmatmul.bf16.gmra.mxu0 %v59
    %v458 = vpop.f32.mrf.mxu0
    %v459 = vadd.f32 %v206, %v458
    %v460 = vpop.f32.mrf.mxu0
    %461 = vdwg.mxu0
    %462 = vmatpush.bf16.msra.mxu0 0
    %463 = vmatpush.bf16.msra.mxu0 0
    %464 = vmatpush.bf16.msra.mxu0 0
    %465 = vmatpush.bf16.msra.mxu0 %v441
    %466 = vmatpush.bf16.msra.mxu0 %v393
    %467 = vmatpush.bf16.msra.mxu0 %v390
    %468 = vmatpush.bf16.msra.mxu0 %v387
    %469 = vmatpush.bf16.msra.mxu0 %v384
    %470 = vmatmul.bf16.gmra.mxu0 %v437
    %v471 = vpop.f32.mrf.mxu0
    %v472 = vadd.f32 %v459, %v471
    %v473 = vpop.f32.mrf.mxu0
    %474 = vdwg.mxu0
    %475 = vmatpush.bf16.msra.mxu0 %v382
    %476 = vmatpush.bf16.msra.mxu0 %v379
    %477 = vmatpush.bf16.msra.mxu0 %v376
    %478 = vmatpush.bf16.msra.mxu0 %v373
    %479 = vmatpush.bf16.msra.mxu0 %v370
    %480 = vmatpush.bf16.msra.mxu0 %v367
    %481 = vmatpush.bf16.msra.mxu0 %v364
    %482 = vmatpush.bf16.msra.mxu0 %v361
    %483 = vmatmul.bf16.gmra.mxu0 %v59
    %v484 = vpop.f32.mrf.mxu0
    %v485 = vadd.f32 %v219, %v484
    %v486 = vpop.f32.mrf.mxu0
    %487 = vdwg.mxu0
    %488 = vmatpush.bf16.msra.mxu0 0
    %489 = vmatpush.bf16.msra.mxu0 0
    %490 = vmatpush.bf16.msra.mxu0 0
    %491 = vmatpush.bf16.msra.mxu0 %v444
    %492 = vmatpush.bf16.msra.mxu0 %v394
    %493 = vmatpush.bf16.msra.mxu0 %v391
    %494 = vmatpush.bf16.msra.mxu0 %v388
    %495 = vmatpush.bf16.msra.mxu0 %v385
    %496 = vmatmul.bf16.gmra.mxu0 %v437
    %v497 = vpop.f32.mrf.mxu0
    %v498 = vadd.f32 %v485, %v497
    %v499 = vpop.f32.mrf.mxu0
    %500 = vdwg.mxu0
    %501 = vmatpush.bf16.msra.mxu0 %v383
    %502 = vmatpush.bf16.msra.mxu0 %v380
    %503 = vmatpush.bf16.msra.mxu0 %v377
    %504 = vmatpush.bf16.msra.mxu0 %v374
    %505 = vmatpush.bf16.msra.mxu0 %v371
    %506 = vmatpush.bf16.msra.mxu0 %v368
    %507 = vmatpush.bf16.msra.mxu0 %v365
    %508 = vmatpush.bf16.msra.mxu0 %v362
    %509 = vmatmul.bf16.gmra.mxu0 %v59
    %v510 = vpop.f32.mrf.mxu0
    %v511 = vadd.f32 %v232, %v510
    %v512 = vpop.f32.mrf.mxu0
    %513 = vdwg.mxu0
    %514 = vmatpush.bf16.msra.mxu0 0
    %515 = vmatpush.bf16.msra.mxu0 0
    %516 = vmatpush.bf16.msra.mxu0 0
    %517 = vmatpush.bf16.msra.mxu0 %v447
    %518 = vmatpush.bf16.msra.mxu0 %v395
    %519 = vmatpush.bf16.msra.mxu0 %v392
    %520 = vmatpush.bf16.msra.mxu0 %v389
    %521 = vmatpush.bf16.msra.mxu0 %v386
    %522 = vmatmul.bf16.gmra.mxu0 %v437
    %v523 = vpop.f32.mrf.mxu0
    %v524 = vadd.f32 %v511, %v523
    %v525 = vpop.f32.mrf.mxu0
    %526 = vdwg.mxu0
    %v527 = vld [vmem:[%s2] ss:$8 sm:$0x7]
    %v529 = vperm.slane %v527, 0
    %v530 = vperm.slane %v527, 1
    %v531 = vperm.slane %v527, 2
    %v535 = vadd.f32 %v472, %v529
    %v536 = vadd.f32 %v498, %v530
    %v537 = vadd.f32 %v524, %v531
    %s538 = scalar_lea.vmem %s2, 1
    %v539 = vld [vmem:[%s538] ss:$8 sm:$0x7]
    %s540 = scalar_lea.vmem %s2, 2
    %v541 = vld [vmem:[%s540] ss:$8 sm:$0x7]
    %v542 = vrot.slane %v535, 4
    %v543 = vadd.f32 %v535, %v542
    %v544 = vrot.slane %v543, 2
    %v545 = vadd.f32 %v543, %v544
    %v546 = vrot.slane %v545, 1
    %v547 = vadd.f32 %v545, %v546
    %v548 = vrot.slane %v536, 4
    %v549 = vadd.f32 %v536, %v548
    %v550 = vrot.slane %v549, 2
    %v551 = vadd.f32 %v549, %v550
    %v552 = vrot.slane %v551, 1
    %v553 = vadd.f32 %v551, %v552
    %vm554 = vcmask 359424
    %v555 = vsel %vm554, %v537, 0.0
    %v556 = vrot.slane %v555, 4
    %v557 = vadd.f32 %v555, %v556
    %v558 = vrot.slane %v557, 2
    %v559 = vadd.f32 %v557, %v558
    %v560 = vrot.slane %v559, 1
    %v561 = vadd.f32 %v559, %v560
    %v562 = vrcp.pop 8.0
    %v563 = vmul.f32 8.0, %v562
    %v564 = vsub.f32 1.0, %v563
    %v565 = vmul.f32 %v562, %v564
    %v566 = vadd.f32 %v562, %v565
    %vm567 = vweird.f32 %v562
    %v568 = vsel %vm567, %v562, %v566
    %v569 = vmul.f32 %v547, %v568
    %v570 = vmul.f32 %v553, %v568
    %v571 = vmul.f32 %v561, %v568
    %v572 = vsub.f32 %v535, %v569
    %v573 = vsub.f32 %v536, %v570
    %v574 = vsub.f32 %v537, %v571
    %v575 = vmul.f32 %v572, %v572
    %v576 = vmul.f32 %v573, %v573
    %v577 = vmul.f32 %v574, %v574
    %v578 = vrot.slane %v575, 4
    %v579 = vadd.f32 %v575, %v578
    %v580 = vrot.slane %v579, 2
    %v581 = vadd.f32 %v579, %v580
    %v582 = vrot.slane %v581, 1
    %v583 = vadd.f32 %v581, %v582
    %v584 = vrot.slane %v576, 4
    %v585 = vadd.f32 %v576, %v584
    %v586 = vrot.slane %v585, 2
    %v587 = vadd.f32 %v585, %v586
    %v588 = vrot.slane %v587, 1
    %v589 = vadd.f32 %v587, %v588
    %v590 = vsel %vm554, %v577, 0.0
    %v591 = vrot.slane %v590, 4
    %v592 = vadd.f32 %v590, %v591
    %v593 = vrot.slane %v592, 2
    %v594 = vadd.f32 %v592, %v593
    %v595 = vrot.slane %v594, 1
    %v596 = vadd.f32 %v594, %v595
    %v597 = vmul.f32 %v583, %v568
    %v598 = vmul.f32 %v589, %v568
    %v599 = vmul.f32 %v596, %v568
    %v600 = vadd.f32 %v597, 1e-05
    %v601 = vadd.f32 %v598, 1e-05
    %v602 = vadd.f32 %v599, 1e-05
    %v603 = vrsqrt.pop %v600
    %v604 = vmul.f32 %v603, %v600
    %v605 = vmul.f32 %v604, %v603
    %v606 = vmul.f32 0.5, %v605
    %v607 = vsub.f32 1.5, %v606
    %v608 = vmul.f32 %v603, %v607
    %vm609 = vweird.f32 %v600
    %vm610 = vweird.f32 %v603
    %vm611 = vmor %vm609, %vm610
    %v612 = vsel %vm611, %v603, %v608
    %v613 = vrsqrt.pop %v601
    %v614 = vmul.f32 %v613, %v601
    %v615 = vmul.f32 %v614, %v613
    %v616 = vmul.f32 0.5, %v615
    %v617 = vsub.f32 1.5, %v616
    %v618 = vmul.f32 %v613, %v617
    %vm619 = vweird.f32 %v601
    %vm620 = vweird.f32 %v613
    %vm621 = vmor %vm619, %vm620
    %v622 = vsel %vm621, %v613, %v618
    %v623 = vrsqrt.pop %v602
    %v624 = vmul.f32 %v623, %v602
    %v625 = vmul.f32 %v624, %v623
    %v626 = vmul.f32 0.5, %v625
    %v627 = vsub.f32 1.5, %v626
    %v628 = vmul.f32 %v623, %v627
    %vm629 = vweird.f32 %v602
    %vm630 = vweird.f32 %v623
    %vm631 = vmor %vm629, %vm630
    %v632 = vsel %vm631, %v623, %v628
    %v633 = vmul.f32 %v572, %v612
    %v634 = vmul.f32 %v573, %v622
    %v635 = vmul.f32 %v574, %v632
    %v637 = vperm.slane %v539, 0
    %v638 = vperm.slane %v539, 1
    %v639 = vperm.slane %v539, 2
    %v643 = vmul.f32 %v633, %v637
    %v644 = vmul.f32 %v634, %v638
    %v645 = vmul.f32 %v635, %v639
    %v647 = vperm.slane %v541, 0
    %v648 = vperm.slane %v541, 1
    %v649 = vperm.slane %v541, 2
    %v653 = vadd.f32 %v643, %v647
    %v654 = vadd.f32 %v644, %v648
    %v655 = vadd.f32 %v645, %v649
    %v656 = vxor.u32 %v653, 2147483648
    %v657 = vxor.u32 %v654, 2147483648
    %v658 = vxor.u32 %v655, 2147483648
    %v659 = vmul.f32 %v656, 1.442695
    %v660 = vpow.pop %v659
    %v661 = vmul.f32 %v657, 1.442695
    %v662 = vpow.pop %v661
    %v663 = vmul.f32 %v658, 1.442695
    %v664 = vpow.pop %v663
    %v665 = vadd.f32 %v660, 1.0
    %v666 = vadd.f32 %v662, 1.0
    %v667 = vadd.f32 %v664, 1.0
    %v668 = vrcp.pop %v665
    %v669 = vmul.f32 %v665, %v668
    %v670 = vsub.f32 1.0, %v669
    %v671 = vmul.f32 %v668, %v670
    %v672 = vadd.f32 %v668, %v671
    %vm673 = vweird.f32 %v665
    %vm674 = vweird.f32 %v668
    %vm675 = vmor %vm673, %vm674
    %v676 = vsel %vm675, %v668, %v672
    %v677 = vand.u32 2147483647, %v665
    %vm678 = vcmp.eq.f32.partialorder %v677, 8.507059e+37
    %v679 = vand.u32 %v665, 2147483648
    %v680 = vor.u32 1.1754944e-38, %v679
    %v681 = vsel %vm678, %v680, %v676
    %v682 = vmul.f32 1.0, %v681
    %v683 = vrcp.pop %v666
    %v684 = vmul.f32 %v666, %v683
    %v685 = vsub.f32 1.0, %v684
    %v686 = vmul.f32 %v683, %v685
    %v687 = vadd.f32 %v683, %v686
    %vm688 = vweird.f32 %v666
    %vm689 = vweird.f32 %v683
    %vm690 = vmor %vm688, %vm689
    %v691 = vsel %vm690, %v683, %v687
    %v692 = vand.u32 2147483647, %v666
    %vm693 = vcmp.eq.f32.partialorder %v692, 8.507059e+37
    %v694 = vand.u32 %v666, 2147483648
    %v695 = vor.u32 1.1754944e-38, %v694
    %v696 = vsel %vm693, %v695, %v691
    %v697 = vmul.f32 1.0, %v696
    %v698 = vrcp.pop %v667
    %v699 = vmul.f32 %v667, %v698
    %v700 = vsub.f32 1.0, %v699
    %v701 = vmul.f32 %v698, %v700
    %v702 = vadd.f32 %v698, %v701
    %vm703 = vweird.f32 %v667
    %vm704 = vweird.f32 %v698
    %vm705 = vmor %vm703, %vm704
    %v706 = vsel %vm705, %v698, %v702
    %v707 = vand.u32 2147483647, %v667
    %vm708 = vcmp.eq.f32.partialorder %v707, 8.507059e+37
    %v709 = vand.u32 %v667, 2147483648
    %v710 = vor.u32 1.1754944e-38, %v709
    %v711 = vsel %vm708, %v710, %v706
    %v712 = vmul.f32 1.0, %v711
    %v713 = vmul.f32 %v653, %v682
    %v714 = vmul.f32 %v654, %v697
    %v715 = vmul.f32 %v655, %v712
    %v716 = vpack.c.bf16 %v713, %v713
    %v717 = vpack.c.bf16 %v714, %v714
    %v718 = vpack.c.bf16 %v715, %v715
    %v719 = vld [vmem:[%s5] sm:$0xff]
    %v720 = vld [vmem:[%s5 + $0x8] sm:$0xff]
    %v721 = vld [vmem:[%s5 + $0x10] sm:$0xff]
    %v722 = vld [vmem:[%s5 + $0x18] sm:$0xff]
    %v723 = vld [vmem:[%s5 + $0x20] sm:$0xff]
    %v724 = vld [vmem:[%s5 + $0x28] sm:$0xff]
    %v725 = vld [vmem:[%s5 + $0x30] sm:$0xff]
    %v726 = vld [vmem:[%s5 + $0x38] sm:$0xff]
    %v727 = vld [vmem:[%s5 + $0x40] sm:$0xff]
    %v728 = vld [vmem:[%s5 + $0x48] sm:$0xff]
    %v729 = vld [vmem:[%s5 + $0x50] sm:$0xff]
    %v730 = vld [vmem:[%s5 + $0x58] sm:$0xff]
    %v731 = vld [vmem:[%s5 + $0x60] sm:$0xff]
    %v732 = vld [vmem:[%s5 + $0x68] sm:$0xff]
    %v733 = vld [vmem:[%s5 + $0x70] sm:$0xff]
    %v734 = vld [vmem:[%s5 + $0x78] sm:$0xff]
    %v735 = vld [vmem:[%s5 + $0x80] sm:$0xff]
    %v736 = vld [vmem:[%s5 + $0x88] sm:$0xff]
    %v737 = vld [vmem:[%s5 + $0x90] sm:$0xff]
    %v738 = vld [vmem:[%s5 + $0x98] sm:$0xff]
    %v739 = vld [vmem:[%s5 + $0xa0] sm:$0xff]
    %v740 = vld [vmem:[%s5 + $0xa8] sm:$0xff]
    %v741 = vld [vmem:[%s5 + $0xb0] sm:$0xff]
    %v742 = vld [vmem:[%s5 + $0xb8] sm:$0xff]
    %v743 = vld [vmem:[%s5 + $0xc0] sm:$0xff]
    %v744 = vld [vmem:[%s5 + $0xc8] sm:$0xff]
    %v745 = vld [vmem:[%s5 + $0xd0] sm:$0xff]
    %v746 = vld [vmem:[%s5 + $0xd8] sm:$0xff]
    %v747 = vld [vmem:[%s5 + $0xe0] sm:$0xff]
    %v748 = vld [vmem:[%s5 + $0xe8] sm:$0xff]
    %v749 = vld [vmem:[%s5 + $0xf0] sm:$0xff]
    %v750 = vld [vmem:[%s5 + $0xf8] sm:$0xff]
    %v751 = vld [vmem:[%s5 + $0x100] sm:$0xff]
    %v752 = vld [vmem:[%s5 + $0x108] sm:$0xff]
    %v753 = vld [vmem:[%s5 + $0x110] sm:$0xff]
    %v754 = vld [vmem:[%s5 + $0x118] sm:$0xff]
    %v755 = vld [vmem:[%s5 + $0x120] sm:$0xff]
    %v756 = vld [vmem:[%s5 + $0x128] sm:$0x33]
    %s757 = scalar_lea.vmem %s2, 3
    %v758 = vld [vmem:[%s757] ss:$8 sm:$0x3]
    %v760 = vperm.slane %v758, 0
    %v761 = vperm.slane %v758, 1
    %v802 = vunpack.c.l.b16 %v719
    %v803 = vunpack.c.h.b16 %v719
    %v804 = vunpack.c.l.b16 %v720
    %v805 = vunpack.c.h.b16 %v720
    %v806 = vunpack.c.l.b16 %v721
    %v807 = vunpack.c.h.b16 %v721
    %v808 = vunpack.c.l.b16 %v722
    %v809 = vunpack.c.h.b16 %v722
    %v810 = vunpack.c.l.b16 %v723
    %v811 = vunpack.c.h.b16 %v723
    %v812 = vunpack.c.l.b16 %v724
    %v813 = vunpack.c.h.b16 %v724
    %v814 = vunpack.c.l.b16 %v725
    %v815 = vunpack.c.h.b16 %v725
    %v816 = vunpack.c.l.b16 %v726
    %v817 = vunpack.c.h.b16 %v726
    %v818 = vunpack.c.l.b16 %v727
    %v819 = vunpack.c.h.b16 %v727
    %v820 = vunpack.c.l.b16 %v728
    %v821 = vunpack.c.h.b16 %v728
    %v822 = vunpack.c.l.b16 %v729
    %v823 = vunpack.c.h.b16 %v729
    %v824 = vunpack.c.l.b16 %v730
    %v825 = vunpack.c.h.b16 %v730
    %v826 = vunpack.c.l.b16 %v731
    %v827 = vunpack.c.h.b16 %v731
    %v828 = vunpack.c.l.b16 %v732
    %v829 = vunpack.c.h.b16 %v732
    %v830 = vunpack.c.l.b16 %v733
    %v831 = vunpack.c.h.b16 %v733
    %v832 = vunpack.c.l.b16 %v734
    %v833 = vunpack.c.h.b16 %v734
    %v834 = vunpack.c.l.b16 %v735
    %v835 = vunpack.c.h.b16 %v735
    %v836 = vunpack.c.l.b16 %v736
    %v837 = vunpack.c.h.b16 %v736
    %v838 = vunpack.c.l.b16 %v737
    %v839 = vunpack.c.h.b16 %v737
    %v840 = vunpack.c.l.b16 %v738
    %v841 = vunpack.c.h.b16 %v738
    %v842 = vunpack.c.l.b16 %v739
    %v843 = vunpack.c.h.b16 %v739
    %v844 = vunpack.c.l.b16 %v740
    %v845 = vunpack.c.h.b16 %v740
    %v846 = vunpack.c.l.b16 %v741
    %v847 = vunpack.c.h.b16 %v741
    %v848 = vunpack.c.l.b16 %v742
    %v849 = vunpack.c.h.b16 %v742
    %v850 = vunpack.c.l.b16 %v743
    %v851 = vunpack.c.h.b16 %v743
    %v852 = vunpack.c.l.b16 %v744
    %v853 = vunpack.c.h.b16 %v744
    %v854 = vunpack.c.l.b16 %v745
    %v855 = vunpack.c.h.b16 %v745
    %v856 = vunpack.c.l.b16 %v746
    %v857 = vunpack.c.h.b16 %v746
    %v858 = vunpack.c.l.b16 %v747
    %v859 = vunpack.c.h.b16 %v747
    %v860 = vunpack.c.l.b16 %v748
    %v861 = vunpack.c.h.b16 %v748
    %v862 = vunpack.c.l.b16 %v749
    %v863 = vunpack.c.h.b16 %v749
    %v864 = vunpack.c.l.b16 %v750
    %v865 = vunpack.c.h.b16 %v750
    %v866 = vunpack.c.l.b16 %v751
    %v867 = vunpack.c.h.b16 %v751
    %v868 = vunpack.c.l.b16 %v752
    %v869 = vunpack.c.h.b16 %v752
    %v870 = vunpack.c.l.b16 %v753
    %v871 = vunpack.c.h.b16 %v753
    %v872 = vunpack.c.l.b16 %v754
    %v873 = vunpack.c.h.b16 %v754
    %v874 = vunpack.c.l.b16 %v755
    %v875 = vunpack.c.h.b16 %v755
    %v876 = vunpack.c.l.b16 %v756
    %v877 = vunpack.c.h.b16 %v756
    %v878 = vpack.c.b16 %v804, %v802
    %v879 = vpack.c.b16 %v805, %v803
    %v880 = vpack.c.b16 %v808, %v806
    %v881 = vpack.c.b16 %v809, %v807
    %v882 = vpack.c.b16 %v812, %v810
    %v883 = vpack.c.b16 %v813, %v811
    %v884 = vpack.c.b16 %v816, %v814
    %v885 = vpack.c.b16 %v817, %v815
    %v886 = vpack.c.b16 %v820, %v818
    %v887 = vpack.c.b16 %v821, %v819
    %v888 = vpack.c.b16 %v824, %v822
    %v889 = vpack.c.b16 %v825, %v823
    %v890 = vpack.c.b16 %v828, %v826
    %v891 = vpack.c.b16 %v829, %v827
    %v892 = vpack.c.b16 %v832, %v830
    %v893 = vpack.c.b16 %v833, %v831
    %v894 = vpack.c.b16 %v836, %v834
    %v895 = vpack.c.b16 %v837, %v835
    %v896 = vpack.c.b16 %v840, %v838
    %v897 = vpack.c.b16 %v841, %v839
    %v898 = vpack.c.b16 %v844, %v842
    %v899 = vpack.c.b16 %v845, %v843
    %v900 = vpack.c.b16 %v848, %v846
    %v901 = vpack.c.b16 %v849, %v847
    %v902 = vpack.c.b16 %v852, %v850
    %v903 = vpack.c.b16 %v853, %v851
    %v904 = vpack.c.b16 %v856, %v854
    %v905 = vpack.c.b16 %v857, %v855
    %v906 = vpack.c.b16 %v860, %v858
    %v907 = vpack.c.b16 %v861, %v859
    %v908 = vpack.c.b16 %v864, %v862
    %v909 = vpack.c.b16 %v865, %v863
    %v910 = vpack.c.b16 %v868, %v866
    %v911 = vpack.c.b16 %v869, %v867
    %v912 = vpack.c.b16 %v872, %v870
    %v913 = vpack.c.b16 %v873, %v871
    %v914 = vpack.c.b16 %v876, %v874
    %v915 = vpack.c.b16 %v877, %v875
    %v953 = vsel %vm554, %v718, 0
    %vm955 = vcmask 1045504
    %v957 = vsel %vm955, %v914, 0
    %v960 = vsel %vm955, %v915, 0
    %962 = vmatpush.bf16.msra.mxu0 %v892
    %963 = vmatpush.bf16.msra.mxu0 %v890
    %964 = vmatpush.bf16.msra.mxu0 %v888
    %965 = vmatpush.bf16.msra.mxu0 %v886
    %966 = vmatpush.bf16.msra.mxu0 %v884
    %967 = vmatpush.bf16.msra.mxu0 %v882
    %968 = vmatpush.bf16.msra.mxu0 %v880
    %969 = vmatpush.bf16.msra.mxu0 %v878
    %970 = vmatmul.bf16.gmra.mxu0 %v716
    %v971 = vpop.f32.mrf.mxu0
    %v972 = vadd.f32 %v760, %v971
    %v973 = vpop.f32.mrf.mxu0
    %974 = vdwg.mxu0
    %975 = vmatpush.bf16.msra.mxu0 %v908
    %976 = vmatpush.bf16.msra.mxu0 %v906
    %977 = vmatpush.bf16.msra.mxu0 %v904
    %978 = vmatpush.bf16.msra.mxu0 %v902
    %979 = vmatpush.bf16.msra.mxu0 %v900
    %980 = vmatpush.bf16.msra.mxu0 %v898
    %981 = vmatpush.bf16.msra.mxu0 %v896
    %982 = vmatpush.bf16.msra.mxu0 %v894
    %983 = vmatmul.bf16.gmra.mxu0 %v717
    %v984 = vpop.f32.mrf.mxu0
    %v985 = vadd.f32 %v972, %v984
    %v986 = vpop.f32.mrf.mxu0
    %987 = vdwg.mxu0
    %988 = vmatpush.bf16.msra.mxu0 0
    %989 = vmatpush.bf16.msra.mxu0 0
    %990 = vmatpush.bf16.msra.mxu0 0
    %991 = vmatpush.bf16.msra.mxu0 0
    %992 = vmatpush.bf16.msra.mxu0 0
    %993 = vmatpush.bf16.msra.mxu0 %v957
    %994 = vmatpush.bf16.msra.mxu0 %v912
    %995 = vmatpush.bf16.msra.mxu0 %v910
    %996 = vmatmul.bf16.gmra.mxu0 %v953
    %v997 = vpop.f32.mrf.mxu0
    %v998 = vadd.f32 %v985, %v997
    %v999 = vpop.f32.mrf.mxu0
    %1000 = vdwg.mxu0
    %1001 = vmatpush.bf16.msra.mxu0 %v893
    %1002 = vmatpush.bf16.msra.mxu0 %v891
    %1003 = vmatpush.bf16.msra.mxu0 %v889
    %1004 = vmatpush.bf16.msra.mxu0 %v887
    %1005 = vmatpush.bf16.msra.mxu0 %v885
    %1006 = vmatpush.bf16.msra.mxu0 %v883
    %1007 = vmatpush.bf16.msra.mxu0 %v881
    %1008 = vmatpush.bf16.msra.mxu0 %v879
    %1009 = vmatmul.bf16.gmra.mxu0 %v716
    %v1010 = vpop.f32.mrf.mxu0
    %v1011 = vadd.f32 %v761, %v1010
    %v1012 = vpop.f32.mrf.mxu0
    %1013 = vdwg.mxu0
    %1014 = vmatpush.bf16.msra.mxu0 %v909
    %1015 = vmatpush.bf16.msra.mxu0 %v907
    %1016 = vmatpush.bf16.msra.mxu0 %v905
    %1017 = vmatpush.bf16.msra.mxu0 %v903
    %1018 = vmatpush.bf16.msra.mxu0 %v901
    %1019 = vmatpush.bf16.msra.mxu0 %v899
    %1020 = vmatpush.bf16.msra.mxu0 %v897
    %1021 = vmatpush.bf16.msra.mxu0 %v895
    %1022 = vmatmul.bf16.gmra.mxu0 %v717
    %v1023 = vpop.f32.mrf.mxu0
    %v1024 = vadd.f32 %v1011, %v1023
    %v1025 = vpop.f32.mrf.mxu0
    %1026 = vdwg.mxu0
    %1027 = vmatpush.bf16.msra.mxu0 0
    %1028 = vmatpush.bf16.msra.mxu0 0
    %1029 = vmatpush.bf16.msra.mxu0 0
    %1030 = vmatpush.bf16.msra.mxu0 0
    %1031 = vmatpush.bf16.msra.mxu0 0
    %1032 = vmatpush.bf16.msra.mxu0 %v960
    %1033 = vmatpush.bf16.msra.mxu0 %v913
    %1034 = vmatpush.bf16.msra.mxu0 %v911
    %1035 = vmatmul.bf16.gmra.mxu0 %v953
    %v1036 = vpop.f32.mrf.mxu0
    %v1037 = vadd.f32 %v1024, %v1036
    %v1038 = vpop.f32.mrf.mxu0
    %1039 = vdwg.mxu0
    %s1040 = scalar_lea.vmem %s2, 4
    %v1041 = vld [vmem:[%s1040] ss:$8 sm:$0x3]
    %s1042 = scalar_lea.vmem %s2, 5
    %v1043 = vld [vmem:[%s1042] ss:$8 sm:$0x3]
    %v1044 = vrot.slane %v998, 4
    %v1045 = vadd.f32 %v998, %v1044
    %v1046 = vrot.slane %v1045, 2
    %v1047 = vadd.f32 %v1045, %v1046
    %v1048 = vrot.slane %v1047, 1
    %v1049 = vadd.f32 %v1047, %v1048
    %v1050 = vsel %vm435, %v1037, 0.0
    %v1051 = vrot.slane %v1050, 4
    %v1052 = vadd.f32 %v1050, %v1051
    %v1053 = vrot.slane %v1052, 2
    %v1054 = vadd.f32 %v1052, %v1053
    %v1055 = vrot.slane %v1054, 1
    %v1056 = vadd.f32 %v1054, %v1055
    %v1057 = vmul.f32 %v1049, %v568
    %v1058 = vmul.f32 %v1056, %v568
    %v1059 = vsub.f32 %v998, %v1057
    %v1060 = vsub.f32 %v1037, %v1058
    %v1061 = vmul.f32 %v1059, %v1059
    %v1062 = vmul.f32 %v1060, %v1060
    %v1063 = vrot.slane %v1061, 4
    %v1064 = vadd.f32 %v1061, %v1063
    %v1065 = vrot.slane %v1064, 2
    %v1066 = vadd.f32 %v1064, %v1065
    %v1067 = vrot.slane %v1066, 1
    %v1068 = vadd.f32 %v1066, %v1067
    %v1069 = vsel %vm435, %v1062, 0.0
    %v1070 = vrot.slane %v1069, 4
    %v1071 = vadd.f32 %v1069, %v1070
    %v1072 = vrot.slane %v1071, 2
    %v1073 = vadd.f32 %v1071, %v1072
    %v1074 = vrot.slane %v1073, 1
    %v1075 = vadd.f32 %v1073, %v1074
    %v1076 = vmul.f32 %v1068, %v568
    %v1077 = vmul.f32 %v1075, %v568
    %v1078 = vadd.f32 %v1076, 1e-05
    %v1079 = vadd.f32 %v1077, 1e-05
    %v1080 = vrsqrt.pop %v1078
    %v1081 = vmul.f32 %v1080, %v1078
    %v1082 = vmul.f32 %v1081, %v1080
    %v1083 = vmul.f32 0.5, %v1082
    %v1084 = vsub.f32 1.5, %v1083
    %v1085 = vmul.f32 %v1080, %v1084
    %vm1086 = vweird.f32 %v1078
    %vm1087 = vweird.f32 %v1080
    %vm1088 = vmor %vm1086, %vm1087
    %v1089 = vsel %vm1088, %v1080, %v1085
    %v1090 = vrsqrt.pop %v1079
    %v1091 = vmul.f32 %v1090, %v1079
    %v1092 = vmul.f32 %v1091, %v1090
    %v1093 = vmul.f32 0.5, %v1092
    %v1094 = vsub.f32 1.5, %v1093
    %v1095 = vmul.f32 %v1090, %v1094
    %vm1096 = vweird.f32 %v1079
    %vm1097 = vweird.f32 %v1090
    %vm1098 = vmor %vm1096, %vm1097
    %v1099 = vsel %vm1098, %v1090, %v1095
    %v1100 = vmul.f32 %v1059, %v1089
    %v1101 = vmul.f32 %v1060, %v1099
    %v1103 = vperm.slane %v1041, 0
    %v1104 = vperm.slane %v1041, 1
    %v1107 = vmul.f32 %v1100, %v1103
    %v1108 = vmul.f32 %v1101, %v1104
    %v1110 = vperm.slane %v1043, 0
    %v1111 = vperm.slane %v1043, 1
    %v1114 = vadd.f32 %v1107, %v1110
    %v1115 = vadd.f32 %v1108, %v1111
    %v1116 = vxor.u32 %v1114, 2147483648
    %v1117 = vxor.u32 %v1115, 2147483648
    %v1118 = vmul.f32 %v1116, 1.442695
    %v1119 = vpow.pop %v1118
    %v1120 = vmul.f32 %v1117, 1.442695
    %v1121 = vpow.pop %v1120
    %v1122 = vadd.f32 %v1119, 1.0
    %v1123 = vadd.f32 %v1121, 1.0
    %v1124 = vrcp.pop %v1122
    %v1125 = vmul.f32 %v1122, %v1124
    %v1126 = vsub.f32 1.0, %v1125
    %v1127 = vmul.f32 %v1124, %v1126
    %v1128 = vadd.f32 %v1124, %v1127
    %vm1129 = vweird.f32 %v1122
    %vm1130 = vweird.f32 %v1124
    %vm1131 = vmor %vm1129, %vm1130
    %v1132 = vsel %vm1131, %v1124, %v1128
    %v1133 = vand.u32 2147483647, %v1122
    %vm1134 = vcmp.eq.f32.partialorder %v1133, 8.507059e+37
    %v1135 = vand.u32 %v1122, 2147483648
    %v1136 = vor.u32 1.1754944e-38, %v1135
    %v1137 = vsel %vm1134, %v1136, %v1132
    %v1138 = vmul.f32 1.0, %v1137
    %v1139 = vrcp.pop %v1123
    %v1140 = vmul.f32 %v1123, %v1139
    %v1141 = vsub.f32 1.0, %v1140
    %v1142 = vmul.f32 %v1139, %v1141
    %v1143 = vadd.f32 %v1139, %v1142
    %vm1144 = vweird.f32 %v1123
    %vm1145 = vweird.f32 %v1139
    %vm1146 = vmor %vm1144, %vm1145
    %v1147 = vsel %vm1146, %v1139, %v1143
    %v1148 = vand.u32 2147483647, %v1123
    %vm1149 = vcmp.eq.f32.partialorder %v1148, 8.507059e+37
    %v1150 = vand.u32 %v1123, 2147483648
    %v1151 = vor.u32 1.1754944e-38, %v1150
    %v1152 = vsel %vm1149, %v1151, %v1147
    %v1153 = vmul.f32 1.0, %v1152
    %v1154 = vmul.f32 %v1114, %v1138
    %v1155 = vmul.f32 %v1115, %v1153
    %v1156 = vpack.c.bf16 %v1154, %v1154
    %v1157 = vpack.c.bf16 %v1155, %v1155
    %v1158 = vld [vmem:[%s6] sm:$0xf]
    %v1159 = vld [vmem:[%s6 + $0x4] sm:$0xf]
    %v1160 = vld [vmem:[%s6 + $0x8] sm:$0xf]
    %v1161 = vld [vmem:[%s6 + $0xc] sm:$0xf]
    %v1162 = vld [vmem:[%s6 + $0x10] sm:$0xf]
    %v1163 = vld [vmem:[%s6 + $0x14] sm:$0xf]
    %v1164 = vld [vmem:[%s6 + $0x18] sm:$0xf]
    %v1165 = vld [vmem:[%s6 + $0x1c] sm:$0xf]
    %v1166 = vld [vmem:[%s6 + $0x20] sm:$0xf]
    %v1167 = vld [vmem:[%s6 + $0x24] sm:$0xf]
    %v1168 = vld [vmem:[%s6 + $0x28] sm:$0xf]
    %v1169 = vld [vmem:[%s6 + $0x2c] sm:$0xf]
    %v1170 = vld [vmem:[%s6 + $0x30] sm:$0xf]
    %v1171 = vld [vmem:[%s6 + $0x34] sm:$0xf]
    %v1172 = vld [vmem:[%s6 + $0x38] sm:$0xf]
    %v1173 = vld [vmem:[%s6 + $0x3c] sm:$0xf]
    %v1174 = vld [vmem:[%s6 + $0x40] sm:$0xf]
    %v1175 = vld [vmem:[%s6 + $0x44] sm:$0xf]
    %v1176 = vld [vmem:[%s6 + $0x48] sm:$0xf]
    %v1177 = vld [vmem:[%s6 + $0x4c] sm:$0xf]
    %v1178 = vld [vmem:[%s6 + $0x50] sm:$0xf]
    %v1179 = vld [vmem:[%s6 + $0x54] sm:$0xf]
    %v1180 = vld [vmem:[%s6 + $0x58] sm:$0xf]
    %v1181 = vld [vmem:[%s6 + $0x5c] sm:$0xf]
    %v1182 = vld [vmem:[%s6 + $0x60] sm:$0xf]
    %v1183 = vld [vmem:[%s2 + $0x6] ss:$0 sm:$0xff]
    %v1209 = vunpack.c.l.b16 %v1158
    %v1210 = vunpack.c.l.b16 %v1159
    %v1211 = vunpack.c.l.b16 %v1160
    %v1212 = vunpack.c.l.b16 %v1161
    %v1213 = vunpack.c.l.b16 %v1162
    %v1214 = vunpack.c.l.b16 %v1163
    %v1215 = vunpack.c.l.b16 %v1164
    %v1216 = vunpack.c.l.b16 %v1165
    %v1217 = vunpack.c.l.b16 %v1166
    %v1218 = vunpack.c.l.b16 %v1167
    %v1219 = vunpack.c.l.b16 %v1168
    %v1220 = vunpack.c.l.b16 %v1169
    %v1221 = vunpack.c.l.b16 %v1170
    %v1222 = vunpack.c.l.b16 %v1171
    %v1223 = vunpack.c.l.b16 %v1172
    %v1224 = vunpack.c.l.b16 %v1173
    %v1225 = vunpack.c.l.b16 %v1174
    %v1226 = vunpack.c.l.b16 %v1175
    %v1227 = vunpack.c.l.b16 %v1176
    %v1228 = vunpack.c.l.b16 %v1177
    %v1229 = vunpack.c.l.b16 %v1178
    %v1230 = vunpack.c.l.b16 %v1179
    %v1231 = vunpack.c.l.b16 %v1180
    %v1232 = vunpack.c.l.b16 %v1181
    %v1233 = vunpack.c.l.b16 %v1182
    %v1234 = vpack.c.b16 %v1210, %v1209
    %v1235 = vpack.c.b16 %v1212, %v1211
    %v1236 = vpack.c.b16 %v1214, %v1213
    %v1237 = vpack.c.b16 %v1216, %v1215
    %v1238 = vpack.c.b16 %v1218, %v1217
    %v1239 = vpack.c.b16 %v1220, %v1219
    %v1240 = vpack.c.b16 %v1222, %v1221
    %v1241 = vpack.c.b16 %v1224, %v1223
    %v1242 = vpack.c.b16 %v1226, %v1225
    %v1243 = vpack.c.b16 %v1228, %v1227
    %v1244 = vpack.c.b16 %v1230, %v1229
    %v1245 = vpack.c.b16 %v1232, %v1231
    %v1246 = vpack.c.b16 %v1233, %v1233
    %v1260 = vsel %vm435, %v1157, 0
    %v1263 = vsel %vm439, %v1246, 0
    %1265 = vmatpush.bf16.msra.mxu0 %v1241
    %1266 = vmatpush.bf16.msra.mxu0 %v1240
    %1267 = vmatpush.bf16.msra.mxu0 %v1239
    %1268 = vmatpush.bf16.msra.mxu0 %v1238
    %1269 = vmatpush.bf16.msra.mxu0 %v1237
    %1270 = vmatpush.bf16.msra.mxu0 %v1236
    %1271 = vmatpush.bf16.msra.mxu0 %v1235
    %1272 = vmatpush.bf16.msra.mxu0 %v1234
    %1273 = vmatmul.bf16.gmra.mxu0 %v1156
    %v1274 = vpop.f32.mrf.mxu0
    %v1275 = vadd.f32 %v1183, %v1274
    %v1276 = vpop.f32.mrf.mxu0
    %1277 = vdwg.mxu0
    %1278 = vmatpush.bf16.msra.mxu0 0
    %1279 = vmatpush.bf16.msra.mxu0 0
    %1280 = vmatpush.bf16.msra.mxu0 0
    %1281 = vmatpush.bf16.msra.mxu0 %v1263
    %1282 = vmatpush.bf16.msra.mxu0 %v1245
    %1283 = vmatpush.bf16.msra.mxu0 %v1244
    %1284 = vmatpush.bf16.msra.mxu0 %v1243
    %1285 = vmatpush.bf16.msra.mxu0 %v1242
    %1286 = vmatmul.bf16.gmra.mxu0 %v1260
    %v1287 = vpop.f32.mrf.mxu0
    %v1288 = vadd.f32 %v1275, %v1287
    %v1289 = vpop.f32.mrf.mxu0
    %1290 = vdwg.mxu0
    %v1291 = vld [vmem:[%s2 + $0x7] ss:$0 sm:$0xff]
    %v1292 = vld [vmem:[%s2 + $0x18] ss:$0 sm:$0xff]
    %vm1293 = vcmask 818176
    %v1294 = vsel %vm1293, %v1288, 0.0
    %v1295 = vrot.slane %v1294, 4
    %v1296 = vadd.f32 %v1294, %v1295
    %v1297 = vrot.slane %v1296, 2
    %v1298 = vadd.f32 %v1296, %v1297
    %v1299 = vrot.slane %v1298, 1
    %v1300 = vadd.f32 %v1298, %v1299
    %v1301 = vmul.f32 %v1300, %v568
    %v1302 = vsub.f32 %v1288, %v1301
    %v1303 = vmul.f32 %v1302, %v1302
    %v1304 = vsel %vm1293, %v1303, 0.0
    %v1305 = vrot.slane %v1304, 4
    %v1306 = vadd.f32 %v1304, %v1305
    %v1307 = vrot.slane %v1306, 2
    %v1308 = vadd.f32 %v1306, %v1307
    %v1309 = vrot.slane %v1308, 1
    %v1310 = vadd.f32 %v1308, %v1309
    %v1311 = vmul.f32 %v1310, %v568
    %v1312 = vadd.f32 %v1311, 1e-05
    %v1313 = vrsqrt.pop %v1312
    %v1314 = vmul.f32 %v1313, %v1312
    %v1315 = vmul.f32 %v1314, %v1313
    %v1316 = vmul.f32 0.5, %v1315
    %v1317 = vsub.f32 1.5, %v1316
    %v1318 = vmul.f32 %v1313, %v1317
    %vm1319 = vweird.f32 %v1312
    %vm1320 = vweird.f32 %v1313
    %vm1321 = vmor %vm1319, %vm1320
    %v1322 = vsel %vm1321, %v1313, %v1318
    %v1323 = vmul.f32 %v1302, %v1322
    %v1324 = vmul.f32 %v1323, %v1291
    %v1325 = vadd.f32 %v1324, %v1292
    %v1326 = vxor.u32 %v1325, 2147483648
    %v1327 = vmul.f32 %v1326, 1.442695
    %v1328 = vpow.pop %v1327
    %v1329 = vadd.f32 %v1328, 1.0
    %v1330 = vrcp.pop %v1329
    %v1331 = vmul.f32 %v1329, %v1330
    %v1332 = vsub.f32 1.0, %v1331
    %v1333 = vmul.f32 %v1330, %v1332
    %v1334 = vadd.f32 %v1330, %v1333
    %vm1335 = vweird.f32 %v1329
    %vm1336 = vweird.f32 %v1330
    %vm1337 = vmor %vm1335, %vm1336
    %v1338 = vsel %vm1337, %v1330, %v1334
    %v1339 = vand.u32 2147483647, %v1329
    %vm1340 = vcmp.eq.f32.partialorder %v1339, 8.507059e+37
    %v1341 = vand.u32 %v1329, 2147483648
    %v1342 = vor.u32 1.1754944e-38, %v1341
    %v1343 = vsel %vm1340, %v1342, %v1338
    %v1344 = vmul.f32 1.0, %v1343
    %v1345 = vmul.f32 %v1325, %v1344
    %v1346 = vpack.c.bf16 %v1345, %v1345
    %v1347 = vld [vmem:[%s7] sm:$0xf]
    %v1348 = vld [vmem:[%s7 + $0x4] sm:$0xf]
    %v1349 = vld [vmem:[%s7 + $0x8] sm:$0xf]
    %v1350 = vld [vmem:[%s7 + $0xc] sm:$0xf]
    %v1351 = vld [vmem:[%s7 + $0x10] sm:$0xf]
    %v1352 = vld [vmem:[%s7 + $0x14] sm:$0xf]
    %v1353 = vld [vmem:[%s7 + $0x18] sm:$0xf]
    %v1354 = vld [vmem:[%s7 + $0x1c] sm:$0xf]
    %v1355 = vld [vmem:[%s7 + $0x20] sm:$0xf]
    %v1356 = vld [vmem:[%s7 + $0x24] sm:$0xf]
    %v1357 = vld [vmem:[%s7 + $0x28] sm:$0xf]
    %v1358 = vld [vmem:[%s7 + $0x2c] sm:$0xf]
    %v1359 = vld [vmem:[%s7 + $0x30] sm:$0x3]
    %v1360 = vld [vmem:[%s2 + $0x19] ss:$0 sm:$0xff]
    %v1374 = vunpack.c.l.b16 %v1347
    %v1375 = vunpack.c.l.b16 %v1348
    %v1376 = vunpack.c.l.b16 %v1349
    %v1377 = vunpack.c.l.b16 %v1350
    %v1378 = vunpack.c.l.b16 %v1351
    %v1379 = vunpack.c.l.b16 %v1352
    %v1380 = vunpack.c.l.b16 %v1353
    %v1381 = vunpack.c.l.b16 %v1354
    %v1382 = vunpack.c.l.b16 %v1355
    %v1383 = vunpack.c.l.b16 %v1356
    %v1384 = vunpack.c.l.b16 %v1357
    %v1385 = vunpack.c.l.b16 %v1358
    %v1386 = vunpack.c.l.b16 %v1359
    %v1387 = vpack.c.b16 %v1375, %v1374
    %v1388 = vpack.c.b16 %v1377, %v1376
    %v1389 = vpack.c.b16 %v1379, %v1378
    %v1390 = vpack.c.b16 %v1381, %v1380
    %v1391 = vpack.c.b16 %v1383, %v1382
    %v1392 = vpack.c.b16 %v1385, %v1384
    %v1393 = vpack.c.b16 %v1386, %v1386
    %v1401 = vsel %vm1293, %v1346, 0
    %vm1403 = vcmask 1041408
    %v1405 = vsel %vm1403, %v1393, 0
    %1407 = vmatpush.bf16.msra.mxu0 0
    %1408 = vmatpush.bf16.msra.mxu0 %v1405
    %1409 = vmatpush.bf16.msra.mxu0 %v1392
    %1410 = vmatpush.bf16.msra.mxu0 %v1391
    %1411 = vmatpush.bf16.msra.mxu0 %v1390
    %1412 = vmatpush.bf16.msra.mxu0 %v1389
    %1413 = vmatpush.bf16.msra.mxu0 %v1388
    %1414 = vmatpush.bf16.msra.mxu0 %v1387
    %1415 = vmatmul.bf16.gmra.mxu0 %v1401
    %v1416 = vpop.f32.mrf.mxu0
    %v1417 = vadd.f32 %v1360, %v1416
    %v1418 = vpop.f32.mrf.mxu0
    %1419 = vdwg.mxu0
    %1420 = vst [vmem:[#allocation5] sm:$0xff] %v1417
    // Predicated region
    $region38: #{tpu_custom_call.1} parent=1 // pred_check
      _
    $region39: #{tpu_custom_call.1} parent=1 // pred_check_branch
      %1422 = sbr.rel (0) target = $region41
    $region40: #{tpu_custom_call.1} parent=1 // pred_region
      %1424 = vsyncadd [#allocation4], 0
      %s1426 = sshll.u32 [#allocation5], 4
      %s1427 = int_to_ptr.vmem [resolvable:$true] %s1426
      %s1428 = sshll.u32 %s8, 4
      %s1429 = int_to_ptr.hbm [resolvable:$true] %s1428
      %1431 = dma.vmem_to_hbm [thread:$0]  %s1427, 128, %s1429, [#allocation4]
    $region41: #{tpu_custom_call.1} parent=1 // pred_fallthru
      _
    // Predicated region
    $region42: #{tpu_custom_call.1} parent=1 // pred_check
      _
    $region43: #{tpu_custom_call.1} parent=1 // pred_check_branch
      %1433 = sbr.rel (0) target = $region45
    $region44: #{tpu_custom_call.1} parent=1 // pred_region
      %1435 = dma.done [#allocation4], 128
    $region45: #{tpu_custom_call.1} parent=1 // pred_fallthru
      _
    %1436 = vsyncpa [#allocation3], 1
    %1437 = vsyncpa [#allocation4], 1

</llo_original>
